<compile_context>
chip_gen: v7x
topology: tpu7x:2x2x1
jax: 0.10.0
libtpu: 0.0.40
codegen_flags: <defaults>
</compile_context>

<pallas_src>
import jax
import jax.numpy as jnp
from jax.experimental import pallas as pl
from jax.experimental.pallas import tpu as pltpu

LOG_STD_MIN = -20.0
LOG_STD_MAX = 2.0


def _round_up(x, m):
    return (x + m - 1) // m * m


def _policy_kernel(x_ref, w1_ref, b1_ref, w2_ref, b2_ref,
                   wm_ref, bm_ref, wls_ref, bls_ref,
                   mean_ref, log_std_ref):
    x = x_ref[...]

    # Hidden layer 1: Linear + ReLU (MXU accumulates in f32).
    h = jnp.dot(x, w1_ref[...], preferred_element_type=jnp.float32) + b1_ref[...]
    h = jnp.maximum(h, 0.0)

    # Hidden layer 2: Linear + ReLU.
    h = h.astype(w2_ref.dtype)
    h = jnp.dot(h, w2_ref[...], preferred_element_type=jnp.float32) + b2_ref[...]
    h = jnp.maximum(h, 0.0)

    # Heads: two small matmuls; only log_std gets clamped.
    h = h.astype(wm_ref.dtype)
    mean = jnp.dot(h, wm_ref[...], preferred_element_type=jnp.float32) + bm_ref[...]
    log_std = jnp.dot(h, wls_ref[...], preferred_element_type=jnp.float32) + bls_ref[...]

    mean_ref[...] = mean.astype(mean_ref.dtype)
    log_std_ref[...] = jnp.clip(log_std, LOG_STD_MIN, LOG_STD_MAX).astype(
        log_std_ref.dtype)


def pack_params(params, *, compute_dtype=jnp.bfloat16):
    """One-time packing: cast matmul weights to compute_dtype, keep biases f32.

    Input `params` holds W1,b1,W2,b2,Wm,bm,Wls,bls with W as (in, out) and
    biases as (1, out).  Default compute_dtype is bf16 (f32 MXU accumulation);
    pass jnp.float32 for bit-exact f32 matmuls.
    """
    return {
        "W1": params["W1"].astype(compute_dtype),
        "b1": params["b1"].astype(jnp.float32),
        "W2": params["W2"].astype(compute_dtype),
        "b2": params["b2"].astype(jnp.float32),
        "Wm": params["Wm"].astype(compute_dtype),
        "bm": params["bm"].astype(jnp.float32),
        "Wls": params["Wls"].astype(compute_dtype),
        "bls": params["bls"].astype(jnp.float32),
        "action_dim": params["Wm"].shape[1],
    }


def _choose_tile(B, block_rows):
    """Pick a batch tile: multiple of 8, balanced tiles (minimal tail padding),
    and >= 2 grid steps when the batch allows so v7x megacore gets both TCs."""
    block_rows = max(8, _round_up(block_rows, 8))
    min_tiles = pl.cdiv(B, block_rows)
    num_tiles = max(min_tiles, 2) if B >= 16 else 1
    tb = min(_round_up(pl.cdiv(B, num_tiles), 8), block_rows)
    b_pad = _round_up(B, tb)
    return tb, b_pad


def policy_forward(state, packed, *, block_rows=4096):
    """PolicyNetwork.forward as a single batch-gridded Pallas kernel.

    state:  (B, state_dim) float32
    packed: output of pack_params()
    returns (mean, log_std), each (B, action_dim) float32
    """
    B, state_dim = state.shape
    action_dim = packed["action_dim"]
    compute_dtype = packed["W1"].dtype
    h1 = packed["W1"].shape[1]
    h2 = packed["W2"].shape[1]

    tb, b_pad = _choose_tile(B, block_rows)
    x = state.astype(compute_dtype)
    if b_pad != B:
        x = jnp.pad(x, ((0, b_pad - B), (0, 0)))
    grid = (b_pad // tb,)

    def resident(shape):  # weight/bias stays in VMEM across all grid steps
        return pl.BlockSpec(shape, lambda i: (0, 0))

    itemsize = jnp.dtype(compute_dtype).itemsize
    w_elems = state_dim * h1 + h1 * h2 + 2 * h2 * action_dim
    cost = pl.CostEstimate(
        flops=2 * b_pad * (state_dim * h1 + h1 * h2 + 2 * h2 * action_dim),
        transcendentals=0,
        bytes_accessed=(b_pad * state_dim * itemsize          # streamed state
                        + 2 * b_pad * action_dim * 4          # mean + log_std
                        + w_elems * itemsize                  # weights
                        + (h1 + h2 + 2 * action_dim) * 4),    # biases
    )

    mean, log_std = pl.pallas_call(
        _policy_kernel,
        out_shape=(
            jax.ShapeDtypeStruct((b_pad, action_dim), jnp.float32),
            jax.ShapeDtypeStruct((b_pad, action_dim), jnp.float32),
        ),
        grid_spec=pltpu.PrefetchScalarGridSpec(
            num_scalar_prefetch=0,
            grid=grid,
            in_specs=[
                pl.BlockSpec((tb, state_dim), lambda i: (i, 0)),   # streamed
                resident((state_dim, h1)),
                resident((1, h1)),
                resident((h1, h2)),
                resident((1, h2)),
                resident((h2, action_dim)),
                resident((1, action_dim)),
                resident((h2, action_dim)),
                resident((1, action_dim)),
            ],
            out_specs=[
                pl.BlockSpec((tb, action_dim), lambda i: (i, 0)),
                pl.BlockSpec((tb, action_dim), lambda i: (i, 0)),
            ],
        ),
        compiler_params=pltpu.CompilerParams(
            dimension_semantics=("parallel",),
        ),
        cost_estimate=cost,
    )(x, packed["W1"], packed["b1"], packed["W2"], packed["b2"],
      packed["Wm"], packed["bm"], packed["Wls"], packed["bls"])

    if b_pad != B:
        mean = mean[:B]
        log_std = log_std[:B]
    return mean, log_std


def init_params(key, state_dim, action_dim, hidden_layer_sizes=(64, 64),
                init_w=0.003):
    """Deterministic init mirroring the PyTorch module's __init__.

    Hidden Linear layers: PyTorch default init, U(-1/sqrt(fan_in), 1/sqrt(fan_in))
    mean/log_std heads:   U(-init_w, init_w)
    Weights stored as (in, out) == transpose of nn.Linear.weight.
    """
    h1, h2 = hidden_layer_sizes
    keys = jax.random.split(key, 8)

    def uniform(k, shape, bound):
        return jax.random.uniform(k, shape, jnp.float32, -bound, bound)

    bnd1 = 1.0 / jnp.sqrt(state_dim)
    bnd2 = 1.0 / jnp.sqrt(h1)

    return {
        "W1": uniform(keys[0], (state_dim, h1), bnd1),
        "b1": uniform(keys[1], (1, h1), bnd1),
        "W2": uniform(keys[2], (h1, h2), bnd2),
        "b2": uniform(keys[3], (1, h2), bnd2),
        "Wm": uniform(keys[4], (h2, action_dim), init_w),
        "bm": uniform(keys[5], (1, action_dim), init_w),
        "Wls": uniform(keys[6], (h2, action_dim), init_w),
        "bls": uniform(keys[7], (1, action_dim), init_w),
    }


def _reference_forward(state, params):
    h = jax.nn.relu(state @ params["W1"] + params["b1"])
    h = jax.nn.relu(h @ params["W2"] + params["b2"])
    mean = h @ params["Wm"] + params["bm"]
    log_std = jnp.clip(h @ params["Wls"] + params["bls"], LOG_STD_MIN, LOG_STD_MAX)
    return mean, log_std


if __name__ == "__main__":
    state_dim = 16
    action_dim = 4

    key = jax.random.PRNGKey(0)
    pkey, skey1, skey2 = jax.random.split(key, 3)

    params = init_params(pkey, state_dim, action_dim, hidden_layer_sizes=(64, 64))

    # --- f32 path, batch multiple of 8 (single tile) ------------------------
    batch = 8
    state = jax.random.normal(skey1, (batch, state_dim), dtype=jnp.float32)
    packed_f32 = pack_params(params, compute_dtype=jnp.float32)
    mean, log_std = policy_forward(state, packed_f32)
    jax.block_until_ready((mean, log_std))

    ref_mean, ref_log_std = _reference_forward(state, params)
    assert mean.shape == (batch, action_dim)
    assert log_std.shape == (batch, action_dim)
    assert jnp.allclose(mean, ref_mean, atol=1e-5)
    assert jnp.allclose(log_std, ref_log_std, atol=1e-5)

    # --- f32 path, ragged batch (exercises >=2 tiles + tail padding) --------
    batch2 = 37
    state2 = jax.random.normal(skey2, (batch2, state_dim), dtype=jnp.float32)
    mean2, log_std2 = policy_forward(state2, packed_f32)
    jax.block_until_ready((mean2, log_std2))
    ref_mean2, ref_log_std2 = _reference_forward(state2, params)
    assert mean2.shape == (batch2, action_dim)
    assert jnp.allclose(mean2, ref_mean2, atol=1e-5)
    assert jnp.allclose(log_std2, ref_log_std2, atol=1e-5)

    # --- default bf16 matmul operands (f32 accumulate), looser tolerance ----
    packed_bf16 = pack_params(params)  # compute_dtype defaults to bf16
    mean3, log_std3 = policy_forward(state, packed_bf16)
    jax.block_until_ready((mean3, log_std3))
    assert jnp.allclose(mean3, ref_mean, atol=5e-2, rtol=5e-2)
    assert jnp.allclose(log_std3, ref_log_std, atol=5e-2, rtol=5e-2)

    print("KERNEL_OK")
</pallas_src>

<mosaic_0001>
module attributes {stable_mosaic.version = 11 : i64} {
  func.func @_policy_kernel(%arg0: i32, %arg1: memref<8x16xf32, #tpu.memory_space<vmem>>, %arg2: memref<16x64xf32, #tpu.memory_space<vmem>>, %arg3: memref<1x64xf32, #tpu.memory_space<vmem>>, %arg4: memref<64x64xf32, #tpu.memory_space<vmem>>, %arg5: memref<1x64xf32, #tpu.memory_space<vmem>>, %arg6: memref<64x4xf32, #tpu.memory_space<vmem>>, %arg7: memref<1x4xf32, #tpu.memory_space<vmem>>, %arg8: memref<64x4xf32, #tpu.memory_space<vmem>>, %arg9: memref<1x4xf32, #tpu.memory_space<vmem>>, %arg10: memref<8x4xf32, #tpu.memory_space<vmem>>, %arg11: memref<8x4xf32, #tpu.memory_space<vmem>>) attributes {dimension_semantics = [#tpu.dimension_semantics<parallel>], iteration_bounds = array<i64: 1>, scalar_prefetch = 0 : i64, scratch_operands = 0 : i64, tpu.core_type = #tpu.core_type<tc>, window_params = [{transform_indices = @transform_0, window_bounds = array<i64: 8, 16>}, {pipeline_mode = #tpu.pipeline_mode<synchronous>, transform_indices = @transform_1, window_bounds = array<i64: 16, 64>}, {pipeline_mode = #tpu.pipeline_mode<synchronous>, transform_indices = @transform_2, window_bounds = array<i64: 1, 64>}, {pipeline_mode = #tpu.pipeline_mode<synchronous>, transform_indices = @transform_3, window_bounds = array<i64: 64, 64>}, {pipeline_mode = #tpu.pipeline_mode<synchronous>, transform_indices = @transform_4, window_bounds = array<i64: 1, 64>}, {pipeline_mode = #tpu.pipeline_mode<synchronous>, transform_indices = @transform_5, window_bounds = array<i64: 64, 4>}, {pipeline_mode = #tpu.pipeline_mode<synchronous>, transform_indices = @transform_6, window_bounds = array<i64: 1, 4>}, {pipeline_mode = #tpu.pipeline_mode<synchronous>, transform_indices = @transform_7, window_bounds = array<i64: 64, 4>}, {pipeline_mode = #tpu.pipeline_mode<synchronous>, transform_indices = @transform_8, window_bounds = array<i64: 1, 4>}, {transform_indices = @transform_9, window_bounds = array<i64: 8, 4>}, {transform_indices = @transform_10, window_bounds = array<i64: 8, 4>}]} {
    %c0 = arith.constant 0 : index
    %c0_0 = arith.constant 0 : index
    %0 = vector.load %arg1[%c0, %c0_0] : memref<8x16xf32, #tpu.memory_space<vmem>>, vector<8x16xf32>
    %c0_1 = arith.constant 0 : index
    %c0_2 = arith.constant 0 : index
    %1 = vector.load %arg2[%c0_1, %c0_2] : memref<16x64xf32, #tpu.memory_space<vmem>>, vector<16x64xf32>
    %cst = arith.constant dense<0.000000e+00> : vector<8x64xf32>
    %2 = tpu.matmul %0, %1, %cst {dimension_numbers = #tpu.dot_dimension_numbers<[1], [0], [0], [1], [0, 0, 1, 1], [], []>} : vector<8x16xf32>, vector<16x64xf32>, vector<8x64xf32> -> vector<8x64xf32>
    %c0_3 = arith.constant 0 : index
    %c0_4 = arith.constant 0 : index
    %3 = vector.load %arg3[%c0_3, %c0_4] : memref<1x64xf32, #tpu.memory_space<vmem>>, vector<1x64xf32>
    %4 = vector.broadcast %3 : vector<1x64xf32> to vector<8x64xf32>
    %5 = arith.addf %2, %4 : vector<8x64xf32>
    %cst_5 = arith.constant 0.000000e+00 : f32
    %6 = vector.broadcast %cst_5 : f32 to vector<8x64xf32>
    %7 = arith.maximumf %5, %6 : vector<8x64xf32>
    %c0_6 = arith.constant 0 : index
    %c0_7 = arith.constant 0 : index
    %8 = vector.load %arg4[%c0_6, %c0_7] : memref<64x64xf32, #tpu.memory_space<vmem>>, vector<64x64xf32>
    %cst_8 = arith.constant dense<0.000000e+00> : vector<8x64xf32>
    %9 = tpu.matmul %7, %8, %cst_8 {dimension_numbers = #tpu.dot_dimension_numbers<[1], [0], [0], [1], [0, 0, 1, 1], [], []>} : vector<8x64xf32>, vector<64x64xf32>, vector<8x64xf32> -> vector<8x64xf32>
    %c0_9 = arith.constant 0 : index
    %c0_10 = arith.constant 0 : index
    %10 = vector.load %arg5[%c0_9, %c0_10] : memref<1x64xf32, #tpu.memory_space<vmem>>, vector<1x64xf32>
    %11 = vector.broadcast %10 : vector<1x64xf32> to vector<8x64xf32>
    %12 = arith.addf %9, %11 : vector<8x64xf32>
    %cst_11 = arith.constant 0.000000e+00 : f32
    %13 = vector.broadcast %cst_11 : f32 to vector<8x64xf32>
    %14 = arith.maximumf %12, %13 : vector<8x64xf32>
    %c0_12 = arith.constant 0 : index
    %c0_13 = arith.constant 0 : index
    %15 = vector.load %arg6[%c0_12, %c0_13] : memref<64x4xf32, #tpu.memory_space<vmem>>, vector<64x4xf32>
    %cst_14 = arith.constant dense<0.000000e+00> : vector<8x4xf32>
    %16 = tpu.matmul %14, %15, %cst_14 {dimension_numbers = #tpu.dot_dimension_numbers<[1], [0], [0], [1], [0, 0, 1, 1], [], []>} : vector<8x64xf32>, vector<64x4xf32>, vector<8x4xf32> -> vector<8x4xf32>
    %c0_15 = arith.constant 0 : index
    %c0_16 = arith.constant 0 : index
    %17 = vector.load %arg7[%c0_15, %c0_16] : memref<1x4xf32, #tpu.memory_space<vmem>>, vector<1x4xf32>
    %18 = vector.broadcast %17 : vector<1x4xf32> to vector<8x4xf32>
    %19 = arith.addf %16, %18 : vector<8x4xf32>
    %c0_17 = arith.constant 0 : index
    %c0_18 = arith.constant 0 : index
    %20 = vector.load %arg8[%c0_17, %c0_18] : memref<64x4xf32, #tpu.memory_space<vmem>>, vector<64x4xf32>
    %cst_19 = arith.constant dense<0.000000e+00> : vector<8x4xf32>
    %21 = tpu.matmul %14, %20, %cst_19 {dimension_numbers = #tpu.dot_dimension_numbers<[1], [0], [0], [1], [0, 0, 1, 1], [], []>} : vector<8x64xf32>, vector<64x4xf32>, vector<8x4xf32> -> vector<8x4xf32>
    %c0_20 = arith.constant 0 : index
    %c0_21 = arith.constant 0 : index
    %22 = vector.load %arg9[%c0_20, %c0_21] : memref<1x4xf32, #tpu.memory_space<vmem>>, vector<1x4xf32>
    %23 = vector.broadcast %22 : vector<1x4xf32> to vector<8x4xf32>
    %24 = arith.addf %21, %23 : vector<8x4xf32>
    %c0_22 = arith.constant 0 : index
    %c0_23 = arith.constant 0 : index
    %25 = vector.load %arg10[%c0_22, %c0_23] : memref<8x4xf32, #tpu.memory_space<vmem>>, vector<8x4xf32>
    tpu.vector_store %arg10[%c0_22, %c0_23], %19 {strides = array<i32>} : memref<8x4xf32, #tpu.memory_space<vmem>>, vector<8x4xf32>,
    %cst_24 = arith.constant -2.000000e+01 : f32
    %cst_25 = arith.constant 2.000000e+00 : f32
    %26 = vector.broadcast %cst_24 : f32 to vector<8x4xf32>
    %27 = arith.maximumf %26, %24 : vector<8x4xf32>
    %28 = vector.broadcast %cst_25 : f32 to vector<8x4xf32>
    %29 = arith.minimumf %28, %27 : vector<8x4xf32>
    %c0_26 = arith.constant 0 : index
    %c0_27 = arith.constant 0 : index
    %30 = vector.load %arg11[%c0_26, %c0_27] : memref<8x4xf32, #tpu.memory_space<vmem>>, vector<8x4xf32>
    tpu.vector_store %arg11[%c0_26, %c0_27], %29 {strides = array<i32>} : memref<8x4xf32, #tpu.memory_space<vmem>>, vector<8x4xf32>,
    return
  }
  func.func @transform_0(%arg0: i32) -> (i32, i32) {
    %c0_i32 = arith.constant 0 : i32
    %c0_i32_0 = arith.constant 0 : i32
    return %arg0, %c0_i32 : i32, i32
  }
  func.func @transform_1(%arg0: i32) -> (i32, i32) {
    %c0_i32 = arith.constant 0 : i32
    %c0_i32_0 = arith.constant 0 : i32
    %c0_i32_1 = arith.constant 0 : i32
    return %c0_i32, %c0_i32_0 : i32, i32
  }
  func.func @transform_2(%arg0: i32) -> (i32, i32) {
    %c0_i32 = arith.constant 0 : i32
    %c0_i32_0 = arith.constant 0 : i32
    %c0_i32_1 = arith.constant 0 : i32
    return %c0_i32, %c0_i32_0 : i32, i32
  }
  func.func @transform_3(%arg0: i32) -> (i32, i32) {
    %c0_i32 = arith.constant 0 : i32
    %c0_i32_0 = arith.constant 0 : i32
    %c0_i32_1 = arith.constant 0 : i32
    return %c0_i32, %c0_i32_0 : i32, i32
  }
  func.func @transform_4(%arg0: i32) -> (i32, i32) {
    %c0_i32 = arith.constant 0 : i32
    %c0_i32_0 = arith.constant 0 : i32
    %c0_i32_1 = arith.constant 0 : i32
    return %c0_i32, %c0_i32_0 : i32, i32
  }
  func.func @transform_5(%arg0: i32) -> (i32, i32) {
    %c0_i32 = arith.constant 0 : i32
    %c0_i32_0 = arith.constant 0 : i32
    %c0_i32_1 = arith.constant 0 : i32
    return %c0_i32, %c0_i32_0 : i32, i32
  }
  func.func @transform_6(%arg0: i32) -> (i32, i32) {
    %c0_i32 = arith.constant 0 : i32
    %c0_i32_0 = arith.constant 0 : i32
    %c0_i32_1 = arith.constant 0 : i32
    return %c0_i32, %c0_i32_0 : i32, i32
  }
  func.func @transform_7(%arg0: i32) -> (i32, i32) {
    %c0_i32 = arith.constant 0 : i32
    %c0_i32_0 = arith.constant 0 : i32
    %c0_i32_1 = arith.constant 0 : i32
    return %c0_i32, %c0_i32_0 : i32, i32
  }
  func.func @transform_8(%arg0: i32) -> (i32, i32) {
    %c0_i32 = arith.constant 0 : i32
    %c0_i32_0 = arith.constant 0 : i32
    %c0_i32_1 = arith.constant 0 : i32
    return %c0_i32, %c0_i32_0 : i32, i32
  }
  func.func @transform_9(%arg0: i32) -> (i32, i32) {
    %c0_i32 = arith.constant 0 : i32
    %c0_i32_0 = arith.constant 0 : i32
    return %arg0, %c0_i32 : i32, i32
  }
  func.func @transform_10(%arg0: i32) -> (i32, i32) {
    %c0_i32 = arith.constant 0 : i32
    %c0_i32_0 = arith.constant 0 : i32
    return %arg0, %c0_i32 : i32, i32
  }
}

</mosaic_0001>

<llo_original>
// kernel: tpu_custom_call.1
$region0: #{tpu_custom_call.1}
  #allocation0 [shape = 'u32[]', space=smem, size = 0x4, offset = 0x4, fixed_abs, tag = 'smem constant byte address 0x4 - core index']
  #allocation1 [shape = 'u32[144,128]{1,0:T(1,128)}', space=vmem, size = 0x12000, scoped, tag = 'internal scratch']
  %s0 = inlined_call_operand.vmem [shape: f32[8,16], index: 0, kind: input, shape index: {}]
  %s1 = inlined_call_operand.vmem [shape: f32[16,64], index: 1, kind: input, shape index: {}]
  %s2 = inlined_call_operand.vmem [shape: f32[1,64], index: 2, kind: input, shape index: {}]
  %s3 = inlined_call_operand.vmem [shape: f32[64,64], index: 3, kind: input, shape index: {}]
  %s4 = inlined_call_operand.vmem [shape: f32[1,64], index: 4, kind: input, shape index: {}]
  %s5 = inlined_call_operand.vmem [shape: f32[64,4], index: 5, kind: input, shape index: {}]
  %s6 = inlined_call_operand.vmem [shape: f32[1,4], index: 6, kind: input, shape index: {}]
  %s7 = inlined_call_operand.vmem [shape: f32[64,4], index: 7, kind: input, shape index: {}]
  %s8 = inlined_call_operand.vmem [shape: f32[1,4], index: 8, kind: input, shape index: {}]
  %s9 = inlined_call_operand.vmem [shape: f32[8,4], index: 9, kind: output, shape index: {0}]
  %s10 = inlined_call_operand.vmem [shape: f32[8,4], index: 10, kind: output, shape index: {1}]
  %11 = xla_tuple %s9, %s10
  %s12 = sld [smem:[#allocation0]]
  $region54: #{tpu_custom_call.1} parent=0
    _
  %s14 = ssub.s32 1, %s12
  %s15 = scalar_select 0, %s14, %s12
  // Predicated region
  $region2: #{tpu_custom_call.1} parent=0 // pred_check
    _
  $region3: #{tpu_custom_call.1} parent=0 // pred_check_branch
    %17 = sbr.rel (0) target = $region5
  $region4: #{tpu_custom_call.1} parent=0 // pred_region
    _
  $region5: #{tpu_custom_call.1} parent=0 // pred_fallthru
    _
  // Predicated region
  $region6: #{tpu_custom_call.1} parent=0 // pred_check
    _
  $region7: #{tpu_custom_call.1} parent=0 // pred_check_branch
    %19 = sbr.rel (0) target = $region9
  $region8: #{tpu_custom_call.1} parent=0 // pred_region
    _
  $region9: #{tpu_custom_call.1} parent=0 // pred_fallthru
    _
  // Predicated region
  $region10: #{tpu_custom_call.1} parent=0 // pred_check
    _
  $region11: #{tpu_custom_call.1} parent=0 // pred_check_branch
    %21 = sbr.rel (0) target = $region13
  $region12: #{tpu_custom_call.1} parent=0 // pred_region
    _
  $region13: #{tpu_custom_call.1} parent=0 // pred_fallthru
    _
  // Predicated region
  $region14: #{tpu_custom_call.1} parent=0 // pred_check
    _
  $region15: #{tpu_custom_call.1} parent=0 // pred_check_branch
    %23 = sbr.rel (0) target = $region17
  $region16: #{tpu_custom_call.1} parent=0 // pred_region
    _
  $region17: #{tpu_custom_call.1} parent=0 // pred_fallthru
    _
  // Predicated region
  $region18: #{tpu_custom_call.1} parent=0 // pred_check
    _
  $region19: #{tpu_custom_call.1} parent=0 // pred_check_branch
    %25 = sbr.rel (0) target = $region21
  $region20: #{tpu_custom_call.1} parent=0 // pred_region
    _
  $region21: #{tpu_custom_call.1} parent=0 // pred_fallthru
    _
  // Predicated region
  $region22: #{tpu_custom_call.1} parent=0 // pred_check
    _
  $region23: #{tpu_custom_call.1} parent=0 // pred_check_branch
    %27 = sbr.rel (0) target = $region25
  $region24: #{tpu_custom_call.1} parent=0 // pred_region
    _
  $region25: #{tpu_custom_call.1} parent=0 // pred_fallthru
    _
  // Predicated region
  $region26: #{tpu_custom_call.1} parent=0 // pred_check
    _
  $region27: #{tpu_custom_call.1} parent=0 // pred_check_branch
    %29 = sbr.rel (0) target = $region29
  $region28: #{tpu_custom_call.1} parent=0 // pred_region
    _
  $region29: #{tpu_custom_call.1} parent=0 // pred_fallthru
    _
  // Predicated region
  $region30: #{tpu_custom_call.1} parent=0 // pred_check
    _
  $region31: #{tpu_custom_call.1} parent=0 // pred_check_branch
    %31 = sbr.rel (0) target = $region33
  $region32: #{tpu_custom_call.1} parent=0 // pred_region
    _
  $region33: #{tpu_custom_call.1} parent=0 // pred_fallthru
    _
  // Predicated region
  $region34: #{tpu_custom_call.1} parent=0 // pred_check
    _
  $region35: #{tpu_custom_call.1} parent=0 // pred_check_branch
    %33 = sbr.rel (0) target = $region37
  $region36: #{tpu_custom_call.1} parent=0 // pred_region
    _
  $region37: #{tpu_custom_call.1} parent=0 // pred_fallthru
    _
  %v34 = vld [vmem:[%s0] sm:$0xff]
  %v35 = vld [vmem:[%s1] sm:$0xff]
  %v36 = vld [vmem:[%s1 + $0x8] sm:$0xff]
  %v37 = vld [vmem:[%s2] sm:$0x1]
  %v39 = vlaneseq
  %v40 = vshrl.u32 %v39, 7
  %v41 = vsub.s32 0, %v40
  %v42 = vrot.slane %v37, %v41
  %vm44 = vcmask 130048
  %v46 = vsel %vm44, %v34, 0
  %48 = vmatprep.subr.mxu0 0.0
  %49 = vmatpush1.msra.mxu0 %v35
  %50 = vmatprep.subr.mxu0 0.0
  %51 = vmatpush1.msra.mxu0 %v36
  %52 = vmatprep.subr.mxu0 0.0
  %53 = vmatpush1.msra.mxu0 0.0
  %54 = vmatprep.subr.mxu0 0.0
  %55 = vmatpush1.msra.mxu0 0.0
  %56 = vmatprep.subr.mxu0 0.0
  %57 = vmatpush1.msra.mxu0 0.0
  %58 = vmatprep.subr.mxu0 0.0
  %59 = vmatpush1.msra.mxu0 0.0
  %60 = vmatprep.subr.mxu0 0.0
  %61 = vmatpush1.msra.mxu0 0.0
  %62 = vmatprep.subr.mxu0 0.0
  %63 = vmatpush1.msra.mxu0 0.0
  %64 = vmatprep.subr.mxu0 0.0
  %65 = vmatpush1.msra.mxu0 0.0
  %66 = vmatprep.subr.mxu0 0.0
  %67 = vmatpush1.msra.mxu0 0.0
  %68 = vmatprep.subr.mxu0 0.0
  %69 = vmatpush1.msra.mxu0 0.0
  %70 = vmatprep.subr.mxu0 0.0
  %71 = vmatpush1.msra.mxu0 0.0
  %72 = vmatprep.subr.mxu0 0.0
  %73 = vmatpush1.msra.mxu0 0.0
  %74 = vmatprep.subr.mxu0 0.0
  %75 = vmatpush1.msra.mxu0 0.0
  %76 = vmatprep.subr.mxu0 0.0
  %77 = vmatpush1.msra.mxu0 0.0
  %78 = vmatprep.subr.mxu0 0.0
  %79 = vmatpush1.msra.mxu0 0.0
  %80 = vmatprep.subr.mxu0 0.0
  %81 = vmatpush1.msra.mxu0 0.0
  %82 = vmatprep.subr.mxu0 0.0
  %83 = vmatpush1.msra.mxu0 0.0
  %84 = vmatprep.subr.mxu0 0.0
  %85 = vmatpush1.msra.mxu0 0.0
  %86 = vmatprep.subr.mxu0 0.0
  %87 = vmatpush1.msra.mxu0 0.0
  %88 = vmatprep.subr.mxu0 0.0
  %89 = vmatpush1.msra.mxu0 0.0
  %90 = vmatprep.subr.mxu0 0.0
  %91 = vmatpush1.msra.mxu0 0.0
  %92 = vmatprep.subr.mxu0 0.0
  %93 = vmatpush1.msra.mxu0 0.0
  %94 = vmatprep.subr.mxu0 0.0
  %95 = vmatpush1.msra.mxu0 0.0
  %96 = vmatprep.subr.mxu0 0.0
  %97 = vmatpush1.msra.mxu0 0.0
  %98 = vmatprep.subr.mxu0 0.0
  %99 = vmatpush1.msra.mxu0 0.0
  %100 = vmatprep.subr.mxu0 0.0
  %101 = vmatpush1.msra.mxu0 0.0
  %102 = vmatprep.subr.mxu0 0.0
  %103 = vmatpush1.msra.mxu0 0.0
  %104 = vmatprep.subr.mxu0 0.0
  %105 = vmatpush1.msra.mxu0 0.0
  %106 = vmatprep.subr.mxu0 0.0
  %107 = vmatpush1.msra.mxu0 0.0
  %108 = vmatprep.subr.mxu0 0.0
  %109 = vmatpush1.msra.mxu0 0.0
  %110 = vmatprep.subr.mxu0 0.0
  %111 = vmatpush1.msra.mxu0 0.0
  %112 = vmatprep.mubr.f32.mxu0 0.0
  %113 = vmatmul.mubr.f32.gmra.mrb[0].mxu0 %v46
  %v114 = vpop.f32.mrb[0].mxu0
  %v115 = vadd.f32 %v42, %v114
  %v116 = vpop.f32.mrb[0].mxu0
  %117 = vdwg.mxu0
  %v118 = vmax.f32 %v115, 0.0
  %v119 = vld [vmem:[%s3] sm:$0xff]
  %v120 = vld [vmem:[%s3 + $0x8] sm:$0xff]
  %v121 = vld [vmem:[%s3 + $0x10] sm:$0xff]
  %v122 = vld [vmem:[%s3 + $0x18] sm:$0xff]
  %v123 = vld [vmem:[%s3 + $0x20] sm:$0xff]
  %v124 = vld [vmem:[%s3 + $0x28] sm:$0xff]
  %v125 = vld [vmem:[%s3 + $0x30] sm:$0xff]
  %v126 = vld [vmem:[%s3 + $0x38] sm:$0xff]
  %v127 = vld [vmem:[%s4] sm:$0x1]
  %v129 = vlaneseq
  %v130 = vshrl.u32 %v129, 7
  %v131 = vsub.s32 0, %v130
  %v132 = vrot.slane %v127, %v131
  %vm134 = vcmask 523264
  %v136 = vsel %vm134, %v118, 0
  %138 = vmatprep.subr.mxu0 0.0
  %139 = vmatpush1.msra.mxu0 %v119
  %140 = vmatprep.subr.mxu0 0.0
  %141 = vmatpush1.msra.mxu0 %v120
  %142 = vmatprep.subr.mxu0 0.0
  %143 = vmatpush1.msra.mxu0 %v121
  %144 = vmatprep.subr.mxu0 0.0
  %145 = vmatpush1.msra.mxu0 %v122
  %146 = vmatprep.subr.mxu0 0.0
  %147 = vmatpush1.msra.mxu0 %v123
  %148 = vmatprep.subr.mxu0 0.0
  %149 = vmatpush1.msra.mxu0 %v124
  %150 = vmatprep.subr.mxu0 0.0
  %151 = vmatpush1.msra.mxu0 %v125
  %152 = vmatprep.subr.mxu0 0.0
  %153 = vmatpush1.msra.mxu0 %v126
  %154 = vmatprep.subr.mxu0 0.0
  %155 = vmatpush1.msra.mxu0 0.0
  %156 = vmatprep.subr.mxu0 0.0
  %157 = vmatpush1.msra.mxu0 0.0
  %158 = vmatprep.subr.mxu0 0.0
  %159 = vmatpush1.msra.mxu0 0.0
  %160 = vmatprep.subr.mxu0 0.0
  %161 = vmatpush1.msra.mxu0 0.0
  %162 = vmatprep.subr.mxu0 0.0
  %163 = vmatpush1.msra.mxu0 0.0
  %164 = vmatprep.subr.mxu0 0.0
  %165 = vmatpush1.msra.mxu0 0.0
  %166 = vmatprep.subr.mxu0 0.0
  %167 = vmatpush1.msra.mxu0 0.0
  %168 = vmatprep.subr.mxu0 0.0
  %169 = vmatpush1.msra.mxu0 0.0
  %170 = vmatprep.subr.mxu0 0.0
  %171 = vmatpush1.msra.mxu0 0.0
  %172 = vmatprep.subr.mxu0 0.0
  %173 = vmatpush1.msra.mxu0 0.0
  %174 = vmatprep.subr.mxu0 0.0
  %175 = vmatpush1.msra.mxu0 0.0
  %176 = vmatprep.subr.mxu0 0.0
  %177 = vmatpush1.msra.mxu0 0.0
  %178 = vmatprep.subr.mxu0 0.0
  %179 = vmatpush1.msra.mxu0 0.0
  %180 = vmatprep.subr.mxu0 0.0
  %181 = vmatpush1.msra.mxu0 0.0
  %182 = vmatprep.subr.mxu0 0.0
  %183 = vmatpush1.msra.mxu0 0.0
  %184 = vmatprep.subr.mxu0 0.0
  %185 = vmatpush1.msra.mxu0 0.0
  %186 = vmatprep.subr.mxu0 0.0
  %187 = vmatpush1.msra.mxu0 0.0
  %188 = vmatprep.subr.mxu0 0.0
  %189 = vmatpush1.msra.mxu0 0.0
  %190 = vmatprep.subr.mxu0 0.0
  %191 = vmatpush1.msra.mxu0 0.0
  %192 = vmatprep.subr.mxu0 0.0
  %193 = vmatpush1.msra.mxu0 0.0
  %194 = vmatprep.subr.mxu0 0.0
  %195 = vmatpush1.msra.mxu0 0.0
  %196 = vmatprep.subr.mxu0 0.0
  %197 = vmatpush1.msra.mxu0 0.0
  %198 = vmatprep.subr.mxu0 0.0
  %199 = vmatpush1.msra.mxu0 0.0
  %200 = vmatprep.subr.mxu0 0.0
  %201 = vmatpush1.msra.mxu0 0.0
  %202 = vmatprep.mubr.f32.mxu0 0.0
  %203 = vmatmul.mubr.f32.gmra.mrb[0].mxu0 %v136
  %v204 = vpop.f32.mrb[0].mxu0
  %v205 = vadd.f32 %v132, %v204
  %v206 = vpop.f32.mrb[0].mxu0
  %207 = vdwg.mxu0
  %v208 = vmax.f32 %v205, 0.0
  %v209 = vld [vmem:[%s5] sm:$0xff]
  %v210 = vld [vmem:[%s5 + $0x8] sm:$0xff]
  %v211 = vld [vmem:[%s5 + $0x10] sm:$0xff]
  %v212 = vld [vmem:[%s5 + $0x18] sm:$0xff]
  %v213 = vld [vmem:[%s5 + $0x20] sm:$0xff]
  %v214 = vld [vmem:[%s5 + $0x28] sm:$0xff]
  %v215 = vld [vmem:[%s5 + $0x30] sm:$0xff]
  %v216 = vld [vmem:[%s5 + $0x38] sm:$0xff]
  %v217 = vld [vmem:[%s6] sm:$0x1]
  %v219 = vlaneseq
  %v220 = vshrl.u32 %v219, 7
  %v221 = vsub.s32 0, %v220
  %v222 = vrot.slane %v217, %v221
  %v225 = vsel %vm134, %v208, 0
  %227 = vmatprep.subr.mxu0 0.0
  %228 = vmatpush1.msra.mxu0 %v209
  %229 = vmatprep.subr.mxu0 0.0
  %230 = vmatpush1.msra.mxu0 %v210
  %231 = vmatprep.subr.mxu0 0.0
  %232 = vmatpush1.msra.mxu0 %v211
  %233 = vmatprep.subr.mxu0 0.0
  %234 = vmatpush1.msra.mxu0 %v212
  %235 = vmatprep.subr.mxu0 0.0
  %236 = vmatpush1.msra.mxu0 %v213
  %237 = vmatprep.subr.mxu0 0.0
  %238 = vmatpush1.msra.mxu0 %v214
  %239 = vmatprep.subr.mxu0 0.0
  %240 = vmatpush1.msra.mxu0 %v215
  %241 = vmatprep.subr.mxu0 0.0
  %242 = vmatpush1.msra.mxu0 %v216
  %243 = vmatprep.subr.mxu0 0.0
  %244 = vmatpush1.msra.mxu0 0.0
  %245 = vmatprep.subr.mxu0 0.0
  %246 = vmatpush1.msra.mxu0 0.0
  %247 = vmatprep.subr.mxu0 0.0
  %248 = vmatpush1.msra.mxu0 0.0
  %249 = vmatprep.subr.mxu0 0.0
  %250 = vmatpush1.msra.mxu0 0.0
  %251 = vmatprep.subr.mxu0 0.0
  %252 = vmatpush1.msra.mxu0 0.0
  %253 = vmatprep.subr.mxu0 0.0
  %254 = vmatpush1.msra.mxu0 0.0
  %255 = vmatprep.subr.mxu0 0.0
  %256 = vmatpush1.msra.mxu0 0.0
  %257 = vmatprep.subr.mxu0 0.0
  %258 = vmatpush1.msra.mxu0 0.0
  %259 = vmatprep.subr.mxu0 0.0
  %260 = vmatpush1.msra.mxu0 0.0
  %261 = vmatprep.subr.mxu0 0.0
  %262 = vmatpush1.msra.mxu0 0.0
  %263 = vmatprep.subr.mxu0 0.0
  %264 = vmatpush1.msra.mxu0 0.0
  %265 = vmatprep.subr.mxu0 0.0
  %266 = vmatpush1.msra.mxu0 0.0
  %267 = vmatprep.subr.mxu0 0.0
  %268 = vmatpush1.msra.mxu0 0.0
  %269 = vmatprep.subr.mxu0 0.0
  %270 = vmatpush1.msra.mxu0 0.0
  %271 = vmatprep.subr.mxu0 0.0
  %272 = vmatpush1.msra.mxu0 0.0
  %273 = vmatprep.subr.mxu0 0.0
  %274 = vmatpush1.msra.mxu0 0.0
  %275 = vmatprep.subr.mxu0 0.0
  %276 = vmatpush1.msra.mxu0 0.0
  %277 = vmatprep.subr.mxu0 0.0
  %278 = vmatpush1.msra.mxu0 0.0
  %279 = vmatprep.subr.mxu0 0.0
  %280 = vmatpush1.msra.mxu0 0.0
  %281 = vmatprep.subr.mxu0 0.0
  %282 = vmatpush1.msra.mxu0 0.0
  %283 = vmatprep.subr.mxu0 0.0
  %284 = vmatpush1.msra.mxu0 0.0
  %285 = vmatprep.subr.mxu0 0.0
  %286 = vmatpush1.msra.mxu0 0.0
  %287 = vmatprep.subr.mxu0 0.0
  %288 = vmatpush1.msra.mxu0 0.0
  %289 = vmatprep.subr.mxu0 0.0
  %290 = vmatpush1.msra.mxu0 0.0
  %291 = vmatprep.mubr.f32.mxu0 0.0
  %292 = vmatmul.mubr.f32.gmra.mrb[0].mxu0 %v225
  %v293 = vpop.f32.mrb[0].mxu0
  %v294 = vadd.f32 %v222, %v293
  %v295 = vpop.f32.mrb[0].mxu0
  %296 = vdwg.mxu0
  %v297 = vld [vmem:[%s7] sm:$0xff]
  %v298 = vld [vmem:[%s7 + $0x8] sm:$0xff]
  %v299 = vld [vmem:[%s7 + $0x10] sm:$0xff]
  %v300 = vld [vmem:[%s7 + $0x18] sm:$0xff]
  %v301 = vld [vmem:[%s7 + $0x20] sm:$0xff]
  %v302 = vld [vmem:[%s7 + $0x28] sm:$0xff]
  %v303 = vld [vmem:[%s7 + $0x30] sm:$0xff]
  %v304 = vld [vmem:[%s7 + $0x38] sm:$0xff]
  %v305 = vld [vmem:[%s8] sm:$0x1]
  %v307 = vlaneseq
  %v308 = vshrl.u32 %v307, 7
  %v309 = vsub.s32 0, %v308
  %v310 = vrot.slane %v305, %v309
  %312 = vmatprep.subr.mxu0 0.0
  %313 = vmatpush1.msra.mxu0 %v297
  %314 = vmatprep.subr.mxu0 0.0
  %315 = vmatpush1.msra.mxu0 %v298
  %316 = vmatprep.subr.mxu0 0.0
  %317 = vmatpush1.msra.mxu0 %v299
  %318 = vmatprep.subr.mxu0 0.0
  %319 = vmatpush1.msra.mxu0 %v300
  %320 = vmatprep.subr.mxu0 0.0
  %321 = vmatpush1.msra.mxu0 %v301
  %322 = vmatprep.subr.mxu0 0.0
  %323 = vmatpush1.msra.mxu0 %v302
  %324 = vmatprep.subr.mxu0 0.0
  %325 = vmatpush1.msra.mxu0 %v303
  %326 = vmatprep.subr.mxu0 0.0
  %327 = vmatpush1.msra.mxu0 %v304
  %328 = vmatprep.subr.mxu0 0.0
  %329 = vmatpush1.msra.mxu0 0.0
  %330 = vmatprep.subr.mxu0 0.0
  %331 = vmatpush1.msra.mxu0 0.0
  %332 = vmatprep.subr.mxu0 0.0
  %333 = vmatpush1.msra.mxu0 0.0
  %334 = vmatprep.subr.mxu0 0.0
  %335 = vmatpush1.msra.mxu0 0.0
  %336 = vmatprep.subr.mxu0 0.0
  %337 = vmatpush1.msra.mxu0 0.0
  %338 = vmatprep.subr.mxu0 0.0
  %339 = vmatpush1.msra.mxu0 0.0
  %340 = vmatprep.subr.mxu0 0.0
  %341 = vmatpush1.msra.mxu0 0.0
  %342 = vmatprep.subr.mxu0 0.0
  %343 = vmatpush1.msra.mxu0 0.0
  %344 = vmatprep.subr.mxu0 0.0
  %345 = vmatpush1.msra.mxu0 0.0
  %346 = vmatprep.subr.mxu0 0.0
  %347 = vmatpush1.msra.mxu0 0.0
  %348 = vmatprep.subr.mxu0 0.0
  %349 = vmatpush1.msra.mxu0 0.0
  %350 = vmatprep.subr.mxu0 0.0
  %351 = vmatpush1.msra.mxu0 0.0
  %352 = vmatprep.subr.mxu0 0.0
  %353 = vmatpush1.msra.mxu0 0.0
  %354 = vmatprep.subr.mxu0 0.0
  %355 = vmatpush1.msra.mxu0 0.0
  %356 = vmatprep.subr.mxu0 0.0
  %357 = vmatpush1.msra.mxu0 0.0
  %358 = vmatprep.subr.mxu0 0.0
  %359 = vmatpush1.msra.mxu0 0.0
  %360 = vmatprep.subr.mxu0 0.0
  %361 = vmatpush1.msra.mxu0 0.0
  %362 = vmatprep.subr.mxu0 0.0
  %363 = vmatpush1.msra.mxu0 0.0
  %364 = vmatprep.subr.mxu0 0.0
  %365 = vmatpush1.msra.mxu0 0.0
  %366 = vmatprep.subr.mxu0 0.0
  %367 = vmatpush1.msra.mxu0 0.0
  %368 = vmatprep.subr.mxu0 0.0
  %369 = vmatpush1.msra.mxu0 0.0
  %370 = vmatprep.subr.mxu0 0.0
  %371 = vmatpush1.msra.mxu0 0.0
  %372 = vmatprep.subr.mxu0 0.0
  %373 = vmatpush1.msra.mxu0 0.0
  %374 = vmatprep.subr.mxu0 0.0
  %375 = vmatpush1.msra.mxu0 0.0
  %376 = vmatprep.mubr.f32.mxu0 0.0
  %377 = vmatmul.mubr.f32.gmra.mrb[0].mxu0 %v225
  %v378 = vpop.f32.mrb[0].mxu0
  %v379 = vadd.f32 %v310, %v378
  %v380 = vpop.f32.mrb[0].mxu0
  %381 = vdwg.mxu0
  %vm382 = vcmask 31744
  %383 = vst.msk [vmem:[%s9] sm:$0xff] %vm382, %v294
  %v384 = vmax.f32 %v379, -20.0
  %v385 = vmin.f32 %v384, 2.0
  %386 = vst.msk [vmem:[%s10] sm:$0xff] %vm382, %v385
  // Predicated region
  $region38: #{tpu_custom_call.1} parent=0 // pred_check
    _
  $region39: #{tpu_custom_call.1} parent=0 // pred_check_branch
    %388 = sbr.rel (0) target = $region41
  $region40: #{tpu_custom_call.1} parent=0 // pred_region
    _
  $region41: #{tpu_custom_call.1} parent=0 // pred_fallthru
    _
  // Predicated region
  $region42: #{tpu_custom_call.1} parent=0 // pred_check
    _
  $region43: #{tpu_custom_call.1} parent=0 // pred_check_branch
    %390 = sbr.rel (0) target = $region45
  $region44: #{tpu_custom_call.1} parent=0 // pred_region
    _
  $region45: #{tpu_custom_call.1} parent=0 // pred_fallthru
    _
  // Predicated region
  $region46: #{tpu_custom_call.1} parent=0 // pred_check
    _
  $region47: #{tpu_custom_call.1} parent=0 // pred_check_branch
    %392 = sbr.rel (0) target = $region49
  $region48: #{tpu_custom_call.1} parent=0 // pred_region
    _
  $region49: #{tpu_custom_call.1} parent=0 // pred_fallthru
    _
  // Predicated region
  $region50: #{tpu_custom_call.1} parent=0 // pred_check
    _
  $region51: #{tpu_custom_call.1} parent=0 // pred_check_branch
    %394 = sbr.rel (0) target = $region53
  $region52: #{tpu_custom_call.1} parent=0 // pred_region
    _
  $region53: #{tpu_custom_call.1} parent=0 // pred_fallthru
    _

</llo_original>
